<compile_context>
chip_gen: v5e
topology: v5e:2x2
jax: 0.10.0
libtpu: 0.0.40
codegen_flags: <defaults>
</compile_context>

<pallas_src>
import functools

import jax
import jax.numpy as jnp
from jax.experimental import pallas as pl
from jax.experimental.pallas import tpu as pltpu


def _round_up(x, m):
    return ((x + m - 1) // m) * m


def _layernorm_f32(z, gamma, beta, eps):
    # One-pass statistics over the hidden (lane) axis.
    inv_h = jnp.float32(1.0 / z.shape[-1])
    s = jnp.sum(z, axis=-1, keepdims=True)
    s2 = jnp.sum(z * z, axis=-1, keepdims=True)
    mean = s * inv_h
    var = jnp.maximum(s2 * inv_h - mean * mean, 0.0)
    zn = (z - mean) * jax.lax.rsqrt(var + eps)
    return zn * gamma + beta


# ---------------------------------------------------------------------------
# Path A: weights fully resident in VMEM (1-D grid over row tiles).
# ---------------------------------------------------------------------------
def _bert_ffn_resident_kernel(x_ref, w1_ref, b1_ref, w2_ref, b2_ref, g_ref,
                              beta_ref, o_ref, *, eps):
    # x_ref : (TM, H1) f32 row tile (kept f32 so the residual add is exact)
    # w1_ref: (H1, H2) bf16   w2_ref: (H2, H1) bf16   (resident MXU weights)
    x = x_ref[...]
    xb = x.astype(jnp.bfloat16)

    h = jnp.dot(xb, w1_ref[...], preferred_element_type=jnp.float32) + b1_ref[...]
    h = jax.nn.gelu(h, approximate=True)

    y = jnp.dot(h.astype(jnp.bfloat16), w2_ref[...],
                preferred_element_type=jnp.float32) + b2_ref[...]
    z = x + y
    o_ref[...] = _layernorm_f32(z, g_ref[...], beta_ref[...], eps).astype(o_ref.dtype)


# ---------------------------------------------------------------------------
# Path B: H2 (intermediate) dimension streamed, f32 accumulator in VMEM.
#   grid = (row_tiles [parallel], h2_tiles [arbitrary])
# ---------------------------------------------------------------------------
def _bert_ffn_stream_kernel(x_ref, w1_ref, b1_ref, w2_ref, b2_ref, g_ref,
                            beta_ref, o_ref, acc_ref, *, eps):
    k = pl.program_id(1)

    @pl.when(k == 0)
    def _():
        acc_ref[...] = jnp.zeros_like(acc_ref)

    xb = x_ref[...].astype(jnp.bfloat16)
    h = jnp.dot(xb, w1_ref[...], preferred_element_type=jnp.float32) + b1_ref[...]
    h = jax.nn.gelu(h, approximate=True)
    acc_ref[...] += jnp.dot(h.astype(jnp.bfloat16), w2_ref[...],
                            preferred_element_type=jnp.float32)

    @pl.when(k == pl.num_programs(1) - 1)
    def _():
        z = x_ref[...] + acc_ref[...] + b2_ref[...]
        o_ref[...] = _layernorm_f32(z, g_ref[...], beta_ref[...], eps).astype(
            o_ref.dtype)


def _vmem_resident_bytes(tm, h1, h2):
    bf16, f32 = 2, 4
    weights = 2 * 2 * (h1 * h2 * bf16)                    # W1 + W2, 2x buffering
    act_io = 2 * (tm * h1 * f32) * 2                      # x-in + out tiles, 2x buf
    small = 2 * 2 * (h2 + 3 * h1) * f32                   # biases + LN params
    interm = tm * h2 * f32 + 2 * tm * h1 * f32            # h, z temporaries
    return weights + act_io + small + interm


def _vmem_stream_bytes(tm, h1, th2):
    bf16, f32 = 2, 4
    weights = 2 * 2 * (h1 * th2 * bf16)                   # W1/W2 tiles, 2x buffering
    act_io = 2 * (tm * h1 * f32) * 2                      # x-in + out tiles, 2x buf
    small = 2 * 2 * (th2 + 3 * h1) * f32                  # biases + LN params
    acc = tm * h1 * f32                                   # persistent accumulator
    interm = 2 * tm * th2 * f32 + tm * h1 * f32           # h / z temporaries
    return weights + act_io + small + acc + interm


# Conservative per-TensorCore VMEM assumption (v7x has 64 MiB / TC).
_VMEM_PHYS = 64 << 20
_RESIDENT_BUDGET = int(0.70 * _VMEM_PHYS)
_VMEM_CAP = 56 << 20


def bert_network_forward(x, params, *, row_tile=256, h2_tile=512, eps=1e-12,
                         force_stream=False):
    """x: [B, S, H1] float32 -> [B, S, H1] float32."""
    B, S, H1 = x.shape
    w1, b1, w2, b2, gamma, beta = params
    H2 = w1.shape[1]

    rows = B * S
    x2d = x.reshape(rows, H1).astype(jnp.float32)

    # Effective row tile: multiple of 8 (sublane), no larger than needed.
    tm = min(row_tile, _round_up(rows, 8))
    rows_p = _round_up(rows, tm)
    if rows_p != rows:
        # Zero-padded rows are independent under LayerNorm and dropped on output.
        x2d = jnp.pad(x2d, ((0, rows_p - rows), (0, 0)))

    # bf16 weights: native MXU input dtype, halves weight VMEM / HBM traffic.
    w1b = w1.astype(jnp.bfloat16)
    w2b = w2.astype(jnp.bfloat16)

    use_resident = (not force_stream and
                    _vmem_resident_bytes(tm, H1, H2) <= _RESIDENT_BUDGET)

    cost = pl.CostEstimate(
        flops=int(2 * rows_p * (H1 * H2 + H2 * H1)),
        transcendentals=int(rows_p * H2 + rows_p),
        bytes_accessed=int(rows_p * H1 * 4 * 2 + (H1 * H2 + H2 * H1) * 2
                           + (H2 + 3 * H1) * 4),
    )

    if use_resident:
        kernel = functools.partial(_bert_ffn_resident_kernel, eps=eps)
        vmem_limit = int(min(_vmem_resident_bytes(tm, H1, H2) + (8 << 20),
                             _VMEM_CAP))
        out2d = pl.pallas_call(
            kernel,
            out_shape=jax.ShapeDtypeStruct((rows_p, H1), jnp.float32),
            grid_spec=pltpu.PrefetchScalarGridSpec(
                num_scalar_prefetch=0,
                grid=(rows_p // tm,),
                in_specs=[
                    pl.BlockSpec((tm, H1), lambda i: (i, 0)),   # x rows (f32)
                    pl.BlockSpec((H1, H2), lambda i: (0, 0)),   # W1 (resident)
                    pl.BlockSpec((1, H2), lambda i: (0, 0)),    # b1
                    pl.BlockSpec((H2, H1), lambda i: (0, 0)),   # W2 (resident)
                    pl.BlockSpec((1, H1), lambda i: (0, 0)),    # b2
                    pl.BlockSpec((1, H1), lambda i: (0, 0)),    # LN gamma
                    pl.BlockSpec((1, H1), lambda i: (0, 0)),    # LN beta
                ],
                out_specs=pl.BlockSpec((tm, H1), lambda i: (i, 0)),
            ),
            compiler_params=pltpu.CompilerParams(
                dimension_semantics=("parallel",),
                vmem_limit_bytes=vmem_limit),
            cost_estimate=cost,
        )(x2d, w1b, b1, w2b, b2, gamma, beta)
    else:
        # Stream the intermediate (H2) dimension; accumulate y in f32 VMEM.
        th2 = max(128, _round_up(min(h2_tile, H2), 128))
        h2_p = _round_up(H2, th2)
        if h2_p != H2:
            # Zero-padded H2 columns/rows contribute GELU(0) @ 0 == 0.
            w1b = jnp.pad(w1b, ((0, 0), (0, h2_p - H2)))
            b1 = jnp.pad(b1, ((0, 0), (0, h2_p - H2)))
            w2b = jnp.pad(w2b, ((0, h2_p - H2), (0, 0)))

        kernel = functools.partial(_bert_ffn_stream_kernel, eps=eps)
        vmem_limit = int(min(_vmem_stream_bytes(tm, H1, th2) + (8 << 20),
                             _VMEM_CAP))
        out2d = pl.pallas_call(
            kernel,
            out_shape=jax.ShapeDtypeStruct((rows_p, H1), jnp.float32),
            grid_spec=pltpu.PrefetchScalarGridSpec(
                num_scalar_prefetch=0,
                grid=(rows_p // tm, h2_p // th2),
                in_specs=[
                    pl.BlockSpec((tm, H1), lambda i, k: (i, 0)),   # x rows (f32)
                    pl.BlockSpec((H1, th2), lambda i, k: (0, k)),  # W1 tile
                    pl.BlockSpec((1, th2), lambda i, k: (0, k)),   # b1 tile
                    pl.BlockSpec((th2, H1), lambda i, k: (k, 0)),  # W2 tile
                    pl.BlockSpec((1, H1), lambda i, k: (0, 0)),    # b2
                    pl.BlockSpec((1, H1), lambda i, k: (0, 0)),    # LN gamma
                    pl.BlockSpec((1, H1), lambda i, k: (0, 0)),    # LN beta
                ],
                out_specs=pl.BlockSpec((tm, H1), lambda i, k: (i, 0)),
                scratch_shapes=[pltpu.VMEM((tm, H1), jnp.float32)],
            ),
            compiler_params=pltpu.CompilerParams(
                dimension_semantics=("parallel", "arbitrary"),
                vmem_limit_bytes=vmem_limit),
            cost_estimate=cost,
        )(x2d, w1b, b1, w2b, b2, gamma, beta)

    return out2d[:rows].reshape(B, S, H1)


def init_params(key, hidden1, hidden2):
    k1, k2 = jax.random.split(key, 2)
    scale1 = 1.0 / jnp.sqrt(jnp.float32(hidden1))
    scale2 = 1.0 / jnp.sqrt(jnp.float32(hidden2))
    w1 = jax.random.normal(k1, (hidden1, hidden2), jnp.float32) * scale1
    b1 = jnp.zeros((1, hidden2), jnp.float32)
    w2 = jax.random.normal(k2, (hidden2, hidden1), jnp.float32) * scale2
    b2 = jnp.zeros((1, hidden1), jnp.float32)
    gamma = jnp.ones((1, hidden1), jnp.float32)
    beta = jnp.zeros((1, hidden1), jnp.float32)
    return (w1, b1, w2, b2, gamma, beta)


def reference_forward(x, params, eps=1e-12):
    # Mirrors the kernel numerics: bf16 MXU inputs, f32 accumulation, f32 LN.
    w1, b1, w2, b2, gamma, beta = params
    xb = x.astype(jnp.bfloat16)
    h = jnp.einsum("bsh,hd->bsd", xb, w1.astype(jnp.bfloat16),
                   preferred_element_type=jnp.float32) + b1[0]
    h = jax.nn.gelu(h, approximate=True)
    y = jnp.einsum("bsd,dh->bsh", h.astype(jnp.bfloat16), w2.astype(jnp.bfloat16),
                   preferred_element_type=jnp.float32) + b2[0]
    z = x.astype(jnp.float32) + y
    mean = jnp.mean(z, axis=-1, keepdims=True)
    var = jnp.mean((z - mean) ** 2, axis=-1, keepdims=True)
    return (z - mean) * jax.lax.rsqrt(var + eps) * gamma[0] + beta[0]


if __name__ == "__main__":
    key = jax.random.PRNGKey(0)
    kx, kp, kx2, kp2 = jax.random.split(key, 4)

    # --- Path A: resident-weight kernel (small shapes) ---------------------
    batch, seq, hidden1, hidden2 = 2, 8, 32, 64
    x = jax.random.normal(kx, (batch, seq, hidden1), jnp.float32)
    params = init_params(kp, hidden1, hidden2)

    out = jax.block_until_ready(bert_network_forward(x, params))
    ref = reference_forward(x, params)
    assert out.shape == (batch, seq, hidden1)
    assert jnp.allclose(out, ref, atol=2e-3, rtol=2e-3), (
        float(jnp.max(jnp.abs(out - ref))))

    # --- Path B: H2-streamed kernel (forced; validates accumulator path) ---
    b2s, s2s, h1s, h2s = 2, 16, 128, 512
    x2 = jax.random.normal(kx2, (b2s, s2s, h1s), jnp.float32)
    params2 = init_params(kp2, h1s, h2s)

    out2 = jax.block_until_ready(
        bert_network_forward(x2, params2, force_stream=True, h2_tile=256))
    ref2 = reference_forward(x2, params2)
    assert out2.shape == (b2s, s2s, h1s)
    assert jnp.allclose(out2, ref2, atol=2e-3, rtol=2e-3), (
        float(jnp.max(jnp.abs(out2 - ref2))))

    print("KERNEL_OK")
</pallas_src>

<mosaic_0001>
module attributes {stable_mosaic.version = 11 : i64} {
  func.func @_bert_ffn_resident_kernel(%arg0: i32, %arg1: memref<16x32xf32, #tpu.memory_space<vmem>>, %arg2: memref<32x64xbf16, #tpu.memory_space<vmem>>, %arg3: memref<1x64xf32, #tpu.memory_space<vmem>>, %arg4: memref<64x32xbf16, #tpu.memory_space<vmem>>, %arg5: memref<1x32xf32, #tpu.memory_space<vmem>>, %arg6: memref<1x32xf32, #tpu.memory_space<vmem>>, %arg7: memref<1x32xf32, #tpu.memory_space<vmem>>, %arg8: memref<16x32xf32, #tpu.memory_space<vmem>>) attributes {dimension_semantics = [#tpu.dimension_semantics<parallel>], iteration_bounds = array<i64: 1>, scalar_prefetch = 0 : i64, scratch_operands = 0 : i64, tpu.core_type = #tpu.core_type<tc>, window_params = [{transform_indices = @transform_0, window_bounds = array<i64: 16, 32>}, {pipeline_mode = #tpu.pipeline_mode<synchronous>, transform_indices = @transform_1, window_bounds = array<i64: 32, 64>}, {pipeline_mode = #tpu.pipeline_mode<synchronous>, transform_indices = @transform_2, window_bounds = array<i64: 1, 64>}, {pipeline_mode = #tpu.pipeline_mode<synchronous>, transform_indices = @transform_3, window_bounds = array<i64: 64, 32>}, {pipeline_mode = #tpu.pipeline_mode<synchronous>, transform_indices = @transform_4, window_bounds = array<i64: 1, 32>}, {pipeline_mode = #tpu.pipeline_mode<synchronous>, transform_indices = @transform_5, window_bounds = array<i64: 1, 32>}, {pipeline_mode = #tpu.pipeline_mode<synchronous>, transform_indices = @transform_6, window_bounds = array<i64: 1, 32>}, {transform_indices = @transform_7, window_bounds = array<i64: 16, 32>}]} {
    %c0 = arith.constant 0 : index
    %c0_0 = arith.constant 0 : index
    %0 = vector.load %arg1[%c0, %c0_0] : memref<16x32xf32, #tpu.memory_space<vmem>>, vector<16x32xf32>
    %1 = arith.truncf %0 : vector<16x32xf32> to vector<16x32xbf16>
    %c0_1 = arith.constant 0 : index
    %c0_2 = arith.constant 0 : index
    %2 = vector.load %arg2[%c0_1, %c0_2] : memref<32x64xbf16, #tpu.memory_space<vmem>>, vector<32x64xbf16>
    %cst = arith.constant dense<0.000000e+00> : vector<16x64xf32>
    %3 = tpu.matmul %1, %2, %cst {dimension_numbers = #tpu.dot_dimension_numbers<[1], [0], [0], [1], [0, 0, 1, 1], [], []>} : vector<16x32xbf16>, vector<32x64xbf16>, vector<16x64xf32> -> vector<16x64xf32>
    %c0_3 = arith.constant 0 : index
    %c0_4 = arith.constant 0 : index
    %4 = vector.load %arg3[%c0_3, %c0_4] : memref<1x64xf32, #tpu.memory_space<vmem>>, vector<1x64xf32>
    %5 = vector.broadcast %4 : vector<1x64xf32> to vector<16x64xf32>
    %6 = arith.addf %3, %5 : vector<16x64xf32>
    %7 = arith.mulf %6, %6 : vector<16x64xf32>
    %8 = arith.mulf %6, %7 : vector<16x64xf32>
    %cst_5 = arith.constant 4.471500e-02 : f32
    %9 = vector.broadcast %cst_5 : f32 to vector<16x64xf32>
    %10 = arith.mulf %9, %8 : vector<16x64xf32>
    %11 = arith.addf %6, %10 : vector<16x64xf32>
    %cst_6 = arith.constant 0.797884583 : f32
    %12 = vector.broadcast %cst_6 : f32 to vector<16x64xf32>
    %13 = arith.mulf %12, %11 : vector<16x64xf32>
    %14 = math.tanh %13 : vector<16x64xf32>
    %cst_7 = arith.constant 1.000000e+00 : f32
    %15 = vector.broadcast %cst_7 : f32 to vector<16x64xf32>
    %16 = arith.addf %15, %14 : vector<16x64xf32>
    %cst_8 = arith.constant 5.000000e-01 : f32
    %17 = vector.broadcast %cst_8 : f32 to vector<16x64xf32>
    %18 = arith.mulf %17, %16 : vector<16x64xf32>
    %19 = arith.mulf %6, %18 : vector<16x64xf32>
    %20 = arith.truncf %19 : vector<16x64xf32> to vector<16x64xbf16>
    %c0_9 = arith.constant 0 : index
    %c0_10 = arith.constant 0 : index
    %21 = vector.load %arg4[%c0_9, %c0_10] : memref<64x32xbf16, #tpu.memory_space<vmem>>, vector<64x32xbf16>
    %cst_11 = arith.constant dense<0.000000e+00> : vector<16x32xf32>
    %22 = tpu.matmul %20, %21, %cst_11 {dimension_numbers = #tpu.dot_dimension_numbers<[1], [0], [0], [1], [0, 0, 1, 1], [], []>} : vector<16x64xbf16>, vector<64x32xbf16>, vector<16x32xf32> -> vector<16x32xf32>
    %c0_12 = arith.constant 0 : index
    %c0_13 = arith.constant 0 : index
    %23 = vector.load %arg5[%c0_12, %c0_13] : memref<1x32xf32, #tpu.memory_space<vmem>>, vector<1x32xf32>
    %24 = vector.broadcast %23 : vector<1x32xf32> to vector<16x32xf32>
    %25 = arith.addf %22, %24 : vector<16x32xf32>
    %26 = arith.addf %0, %25 : vector<16x32xf32>
    %c0_14 = arith.constant 0 : index
    %c0_15 = arith.constant 0 : index
    %27 = vector.load %arg6[%c0_14, %c0_15] : memref<1x32xf32, #tpu.memory_space<vmem>>, vector<1x32xf32>
    %c0_16 = arith.constant 0 : index
    %c0_17 = arith.constant 0 : index
    %28 = vector.load %arg7[%c0_16, %c0_17] : memref<1x32xf32, #tpu.memory_space<vmem>>, vector<1x32xf32>
    %cst_18 = arith.constant dense<0.000000e+00> : vector<16xf32>
    %29 = vector.multi_reduction <add>, %26, %cst_18 [1] : vector<16x32xf32> to vector<16xf32>
    %30 = vector.shape_cast %29 : vector<16xf32> to vector<16x1xf32>
    %31 = arith.mulf %26, %26 : vector<16x32xf32>
    %cst_19 = arith.constant dense<0.000000e+00> : vector<16xf32>
    %32 = vector.multi_reduction <add>, %31, %cst_19 [1] : vector<16x32xf32> to vector<16xf32>
    %33 = vector.shape_cast %32 : vector<16xf32> to vector<16x1xf32>
    %cst_20 = arith.constant 3.125000e-02 : f32
    %34 = vector.broadcast %cst_20 : f32 to vector<16x1xf32>
    %35 = arith.mulf %30, %34 : vector<16x1xf32>
    %cst_21 = arith.constant 3.125000e-02 : f32
    %36 = vector.broadcast %cst_21 : f32 to vector<16x1xf32>
    %37 = arith.mulf %33, %36 : vector<16x1xf32>
    %38 = arith.mulf %35, %35 : vector<16x1xf32>
    %39 = arith.subf %37, %38 : vector<16x1xf32>
    %cst_22 = arith.constant 0.000000e+00 : f32
    %40 = vector.broadcast %cst_22 : f32 to vector<16x1xf32>
    %41 = arith.maximumf %39, %40 : vector<16x1xf32>
    %42 = vector.broadcast %35 : vector<16x1xf32> to vector<16x32xf32>
    %43 = arith.subf %26, %42 : vector<16x32xf32>
    %cst_23 = arith.constant 9.99999996E-13 : f32
    %44 = vector.broadcast %cst_23 : f32 to vector<16x1xf32>
    %45 = arith.addf %41, %44 : vector<16x1xf32>
    %46 = math.rsqrt %45 : vector<16x1xf32>
    %47 = vector.broadcast %46 : vector<16x1xf32> to vector<16x32xf32>
    %48 = arith.mulf %43, %47 : vector<16x32xf32>
    %49 = vector.broadcast %27 : vector<1x32xf32> to vector<16x32xf32>
    %50 = arith.mulf %48, %49 : vector<16x32xf32>
    %51 = vector.broadcast %28 : vector<1x32xf32> to vector<16x32xf32>
    %52 = arith.addf %50, %51 : vector<16x32xf32>
    %c0_24 = arith.constant 0 : index
    %c0_25 = arith.constant 0 : index
    %53 = vector.load %arg8[%c0_24, %c0_25] : memref<16x32xf32, #tpu.memory_space<vmem>>, vector<16x32xf32>
    tpu.vector_store %arg8[%c0_24, %c0_25], %52 {strides = array<i32>} : memref<16x32xf32, #tpu.memory_space<vmem>>, vector<16x32xf32>,
    return
  }
  func.func @transform_0(%arg0: i32) -> (i32, i32) {
    %c0_i32 = arith.constant 0 : i32
    %c0_i32_0 = arith.constant 0 : i32
    return %arg0, %c0_i32 : i32, i32
  }
  func.func @transform_1(%arg0: i32) -> (i32, i32) {
    %c0_i32 = arith.constant 0 : i32
    %c0_i32_0 = arith.constant 0 : i32
    %c0_i32_1 = arith.constant 0 : i32
    return %c0_i32, %c0_i32_0 : i32, i32
  }
  func.func @transform_2(%arg0: i32) -> (i32, i32) {
    %c0_i32 = arith.constant 0 : i32
    %c0_i32_0 = arith.constant 0 : i32
    %c0_i32_1 = arith.constant 0 : i32
    return %c0_i32, %c0_i32_0 : i32, i32
  }
  func.func @transform_3(%arg0: i32) -> (i32, i32) {
    %c0_i32 = arith.constant 0 : i32
    %c0_i32_0 = arith.constant 0 : i32
    %c0_i32_1 = arith.constant 0 : i32
    return %c0_i32, %c0_i32_0 : i32, i32
  }
  func.func @transform_4(%arg0: i32) -> (i32, i32) {
    %c0_i32 = arith.constant 0 : i32
    %c0_i32_0 = arith.constant 0 : i32
    %c0_i32_1 = arith.constant 0 : i32
    return %c0_i32, %c0_i32_0 : i32, i32
  }
  func.func @transform_5(%arg0: i32) -> (i32, i32) {
    %c0_i32 = arith.constant 0 : i32
    %c0_i32_0 = arith.constant 0 : i32
    %c0_i32_1 = arith.constant 0 : i32
    return %c0_i32, %c0_i32_0 : i32, i32
  }
  func.func @transform_6(%arg0: i32) -> (i32, i32) {
    %c0_i32 = arith.constant 0 : i32
    %c0_i32_0 = arith.constant 0 : i32
    %c0_i32_1 = arith.constant 0 : i32
    return %c0_i32, %c0_i32_0 : i32, i32
  }
  func.func @transform_7(%arg0: i32) -> (i32, i32) {
    %c0_i32 = arith.constant 0 : i32
    %c0_i32_0 = arith.constant 0 : i32
    return %arg0, %c0_i32 : i32, i32
  }
}

</mosaic_0001>

<llo_original>
// kernel: tpu_custom_call.1
$region0: #{tpu_custom_call.1}
  #allocation0 [shape = 'u32[]', space=smem, size = 0x4, offset = 0x4, fixed_abs, tag = 'smem constant byte address 0x4 - core index']
  #allocation1 [shape = 'u32[72,128]{1,0:T(1,128)}', space=vmem, size = 0x9000, scoped, tag = 'internal scratch']
  %s0 = inlined_call_operand.vmem [shape: f32[16,32], index: 0, kind: input, shape index: {}]
  %s1 = inlined_call_operand.vmem [shape: bf16[32,64], index: 1, kind: input, shape index: {}]
  %s2 = inlined_call_operand.vmem [shape: f32[1,64], index: 2, kind: input, shape index: {}]
  %s3 = inlined_call_operand.vmem [shape: bf16[64,32], index: 3, kind: input, shape index: {}]
  %s4 = inlined_call_operand.vmem [shape: f32[1,32], index: 4, kind: input, shape index: {}]
  %s5 = inlined_call_operand.vmem [shape: f32[1,32], index: 5, kind: input, shape index: {}]
  %s6 = inlined_call_operand.vmem [shape: f32[1,32], index: 6, kind: input, shape index: {}]
  %s7 = inlined_call_operand.hbm [shape: f32[16,32], index: 7, kind: output, shape index: {}]
  %s8 = sld [smem:[#allocation0]]
  $region38: #{tpu_custom_call.1} parent=0
    _
  %s10 = ssub.s32 1, %s8
  %s11 = scalar_select 0, %s10, %s8
  $region1: #{tpu_custom_call.1} parent=0
    #allocation2 [shape = 'u8[8192]{0}', space=vmem, size = 0x2000, scoped, tag = 'output window, operand 0, single buffered']
    #allocation3 [shape = 's32[1]{0}', space=sflag, size = 0x4, scoped, tag = 'scoped memory for tpu_custom_call.1']
    %12 = vsyncpa [#allocation3], 0
    // Predicated region
    $region2: #{tpu_custom_call.1} parent=1 // pred_check
      _
    $region3: #{tpu_custom_call.1} parent=1 // pred_check_branch
      %14 = sbr.rel (0) target = $region5
    $region4: #{tpu_custom_call.1} parent=1 // pred_region
      _
    $region5: #{tpu_custom_call.1} parent=1 // pred_fallthru
      _
    // Predicated region
    $region6: #{tpu_custom_call.1} parent=1 // pred_check
      _
    $region7: #{tpu_custom_call.1} parent=1 // pred_check_branch
      %16 = sbr.rel (0) target = $region9
    $region8: #{tpu_custom_call.1} parent=1 // pred_region
      _
    $region9: #{tpu_custom_call.1} parent=1 // pred_fallthru
      _
    // Predicated region
    $region10: #{tpu_custom_call.1} parent=1 // pred_check
      _
    $region11: #{tpu_custom_call.1} parent=1 // pred_check_branch
      %18 = sbr.rel (0) target = $region13
    $region12: #{tpu_custom_call.1} parent=1 // pred_region
      _
    $region13: #{tpu_custom_call.1} parent=1 // pred_fallthru
      _
    // Predicated region
    $region14: #{tpu_custom_call.1} parent=1 // pred_check
      _
    $region15: #{tpu_custom_call.1} parent=1 // pred_check_branch
      %20 = sbr.rel (0) target = $region17
    $region16: #{tpu_custom_call.1} parent=1 // pred_region
      _
    $region17: #{tpu_custom_call.1} parent=1 // pred_fallthru
      _
    // Predicated region
    $region18: #{tpu_custom_call.1} parent=1 // pred_check
      _
    $region19: #{tpu_custom_call.1} parent=1 // pred_check_branch
      %22 = sbr.rel (0) target = $region21
    $region20: #{tpu_custom_call.1} parent=1 // pred_region
      _
    $region21: #{tpu_custom_call.1} parent=1 // pred_fallthru
      _
    // Predicated region
    $region22: #{tpu_custom_call.1} parent=1 // pred_check
      _
    $region23: #{tpu_custom_call.1} parent=1 // pred_check_branch
      %24 = sbr.rel (0) target = $region25
    $region24: #{tpu_custom_call.1} parent=1 // pred_region
      _
    $region25: #{tpu_custom_call.1} parent=1 // pred_fallthru
      _
    // Predicated region
    $region26: #{tpu_custom_call.1} parent=1 // pred_check
      _
    $region27: #{tpu_custom_call.1} parent=1 // pred_check_branch
      %26 = sbr.rel (0) target = $region29
    $region28: #{tpu_custom_call.1} parent=1 // pred_region
      _
    $region29: #{tpu_custom_call.1} parent=1 // pred_fallthru
      _
    %v28 = vld [vmem:[%s0] sm:$0xff]
    %v29 = vld [vmem:[%s0 + $0x8] sm:$0xff]
    %v30 = vpack.c.bf16 %v29, %v28
    %v31 = vld [vmem:[%s1] sm:$0xf]
    %v32 = vld [vmem:[%s1 + $0x4] sm:$0xf]
    %v33 = vld [vmem:[%s1 + $0x8] sm:$0xf]
    %v34 = vld [vmem:[%s1 + $0xc] sm:$0xf]
    %v35 = vld [vmem:[%s2] sm:$0x1]
    %v37 = vperm.slane %v35, 0
    %v43 = vunpack.c.l.b16 %v31
    %v44 = vunpack.c.l.b16 %v32
    %v45 = vunpack.c.l.b16 %v33
    %v46 = vunpack.c.l.b16 %v34
    %v47 = vpack.c.b16 %v44, %v43
    %v48 = vpack.c.b16 %v46, %v45
    %vm51 = vcmask 261120
    %v53 = vsel %vm51, %v30, 0
    %55 = vmatpush.bf16.msra.mxu0 0
    %56 = vmatpush.bf16.msra.mxu0 0
    %57 = vmatpush.bf16.msra.mxu0 0
    %58 = vmatpush.bf16.msra.mxu0 0
    %59 = vmatpush.bf16.msra.mxu0 0
    %60 = vmatpush.bf16.msra.mxu0 0
    %61 = vmatpush.bf16.msra.mxu0 %v48
    %62 = vmatpush.bf16.msra.mxu0 %v47
    %63 = vmatmul.bf16.gmra.mxu0 %v53
    %v64 = vpop.f32.mrf.mxu0
    %v65 = vadd.f32 %v37, %v64
    %v66 = vpop.f32.mrf.mxu0
    %v67 = vadd.f32 %v37, %v66
    %68 = vdwg.mxu0
    %v69 = vmul.f32 %v65, %v65
    %v70 = vmul.f32 %v67, %v67
    %v71 = vmul.f32 %v65, %v69
    %v72 = vmul.f32 %v67, %v70
    %v73 = vmul.f32 %v71, 0.044715
    %v74 = vmul.f32 %v72, 0.044715
    %v75 = vadd.f32 %v65, %v73
    %v76 = vadd.f32 %v67, %v74
    %v77 = vmul.f32 %v75, 0.7978846
    %v78 = vmul.f32 %v76, 0.7978846
    %v79 = vtanh.pop %v77
    %v80 = vtanh.pop %v78
    %v81 = vadd.f32 %v79, 1.0
    %v82 = vadd.f32 %v80, 1.0
    %v83 = vmul.f32 %v81, 0.5
    %v84 = vmul.f32 %v82, 0.5
    %v85 = vmul.f32 %v65, %v83
    %v86 = vmul.f32 %v67, %v84
    %v87 = vpack.c.bf16 %v86, %v85
    %v88 = vld [vmem:[%s3] sm:$0xf]
    %v89 = vld [vmem:[%s3 + $0x4] sm:$0xf]
    %v90 = vld [vmem:[%s3 + $0x8] sm:$0xf]
    %v91 = vld [vmem:[%s3 + $0xc] sm:$0xf]
    %v92 = vld [vmem:[%s3 + $0x10] sm:$0xf]
    %v93 = vld [vmem:[%s3 + $0x14] sm:$0xf]
    %v94 = vld [vmem:[%s3 + $0x18] sm:$0xf]
    %v95 = vld [vmem:[%s3 + $0x1c] sm:$0xf]
    %v96 = vld [vmem:[%s4] sm:$0x1]
    %v98 = vperm.slane %v96, 0
    %v108 = vunpack.c.l.b16 %v88
    %v109 = vunpack.c.l.b16 %v89
    %v110 = vunpack.c.l.b16 %v90
    %v111 = vunpack.c.l.b16 %v91
    %v112 = vunpack.c.l.b16 %v92
    %v113 = vunpack.c.l.b16 %v93
    %v114 = vunpack.c.l.b16 %v94
    %v115 = vunpack.c.l.b16 %v95
    %v116 = vpack.c.b16 %v109, %v108
    %v117 = vpack.c.b16 %v111, %v110
    %v118 = vpack.c.b16 %v113, %v112
    %v119 = vpack.c.b16 %v115, %v114
    %vm124 = vcmask 523264
    %v126 = vsel %vm124, %v87, 0
    %128 = vmatpush.bf16.msra.mxu0 0
    %129 = vmatpush.bf16.msra.mxu0 0
    %130 = vmatpush.bf16.msra.mxu0 0
    %131 = vmatpush.bf16.msra.mxu0 0
    %132 = vmatpush.bf16.msra.mxu0 %v119
    %133 = vmatpush.bf16.msra.mxu0 %v118
    %134 = vmatpush.bf16.msra.mxu0 %v117
    %135 = vmatpush.bf16.msra.mxu0 %v116
    %136 = vmatmul.bf16.gmra.mxu0 %v126
    %v137 = vpop.f32.mrf.mxu0
    %v138 = vadd.f32 %v98, %v137
    %v139 = vpop.f32.mrf.mxu0
    %v140 = vadd.f32 %v98, %v139
    %141 = vdwg.mxu0
    %v142 = vadd.f32 %v28, %v138
    %v143 = vadd.f32 %v29, %v140
    %v144 = vld [vmem:[%s5] sm:$0x1]
    %v145 = vld [vmem:[%s6] sm:$0x1]
    %v146 = vsel %vm51, %v142, 0.0
    %147 = vadd.xlane.f32.xlu0 %v146
    %v148 = vpop.xlane.xlu0 %147
    %v149 = vsel %vm51, %v143, 0.0
    %150 = vadd.xlane.f32.xlu0 %v149
    %v151 = vpop.xlane.xlu0 %150
    %v152 = vmul.f32 %v142, %v142
    %v153 = vmul.f32 %v143, %v143
    %v154 = vsel %vm51, %v152, 0.0
    %155 = vadd.xlane.f32.xlu0 %v154
    %v156 = vpop.xlane.xlu0 %155
    %v157 = vsel %vm51, %v153, 0.0
    %158 = vadd.xlane.f32.xlu0 %v157
    %v159 = vpop.xlane.xlu0 %158
    %v160 = vmul.f32 %v148, 0.03125
    %v161 = vmul.f32 %v151, 0.03125
    %v162 = vmul.f32 %v156, 0.03125
    %v163 = vmul.f32 %v159, 0.03125
    %v164 = vmul.f32 %v160, %v160
    %v165 = vmul.f32 %v161, %v161
    %v166 = vsub.f32 %v162, %v164
    %v167 = vsub.f32 %v163, %v165
    %v168 = vmax.f32 %v166, 0.0
    %v169 = vmax.f32 %v167, 0.0
    %v170 = vsub.f32 %v142, %v160
    %v171 = vsub.f32 %v143, %v161
    %v172 = vadd.f32 %v168, 1e-12
    %v173 = vadd.f32 %v169, 1e-12
    %v174 = vrsqrt.pop %v172
    %v175 = vmul.f32 %v174, %v172
    %v176 = vmul.f32 %v175, %v174
    %v177 = vmul.f32 0.5, %v176
    %v178 = vsub.f32 1.5, %v177
    %v179 = vmul.f32 %v174, %v178
    %vm180 = vweird.f32 %v172
    %vm181 = vweird.f32 %v174
    %vm182 = vmor %vm180, %vm181
    %v183 = vsel %vm182, %v174, %v179
    %v184 = vrsqrt.pop %v173
    %v185 = vmul.f32 %v184, %v173
    %v186 = vmul.f32 %v185, %v184
    %v187 = vmul.f32 0.5, %v186
    %v188 = vsub.f32 1.5, %v187
    %v189 = vmul.f32 %v184, %v188
    %vm190 = vweird.f32 %v173
    %vm191 = vweird.f32 %v184
    %vm192 = vmor %vm190, %vm191
    %v193 = vsel %vm192, %v184, %v189
    %v194 = vmul.f32 %v170, %v183
    %v195 = vmul.f32 %v171, %v193
    %v197 = vperm.slane %v144, 0
    %v199 = vmul.f32 %v194, %v197
    %v200 = vmul.f32 %v195, %v197
    %v202 = vperm.slane %v145, 0
    %v204 = vadd.f32 %v199, %v202
    %v205 = vadd.f32 %v200, %v202
    %206 = vst.msk [vmem:[#allocation2] sm:$0xff] %vm51, %v204
    %207 = vst.msk [vmem:[#allocation2 + $0x8] sm:$0xff] %vm51, %v205
    // Predicated region
    $region30: #{tpu_custom_call.1} parent=1 // pred_check
      _
    $region31: #{tpu_custom_call.1} parent=1 // pred_check_branch
      %209 = sbr.rel (0) target = $region33
    $region32: #{tpu_custom_call.1} parent=1 // pred_region
      %211 = vsyncadd [#allocation3], 0
      %s212 = sshll.u32 [#allocation2], 4
      %s213 = int_to_ptr.vmem [resolvable:$true] %s212
      %s214 = sshll.u32 %s7, 4
      %s215 = int_to_ptr.hbm [resolvable:$true] %s214
      %220 = dma.vmem_to_hbm [thread:$0]  %s213, 256, %s215, [#allocation3], 128, 128, 8
    $region33: #{tpu_custom_call.1} parent=1 // pred_fallthru
      _
    // Predicated region
    $region34: #{tpu_custom_call.1} parent=1 // pred_check
      _
    $region35: #{tpu_custom_call.1} parent=1 // pred_check_branch
      %222 = sbr.rel (0) target = $region37
    $region36: #{tpu_custom_call.1} parent=1 // pred_region
      %224 = dma.done [#allocation3], 256
    $region37: #{tpu_custom_call.1} parent=1 // pred_fallthru
      _
    %225 = vsyncpa [#allocation3], 1

</llo_original>
